<compile_context>
chip_gen: v7x
topology: tpu7x:2x2x1
jax: 0.10.0
libtpu: 0.0.40
codegen_flags: <defaults>
</compile_context>

<pallas_src>
import jax
import jax.numpy as jnp
from jax.experimental import pallas as pl
from jax.experimental.pallas import tpu as pltpu

IN_F, H1, H2, OUT_F = 4, 50, 50, 1
TILE_B = 1024  # lane-dim tile (upper bound; clamped to padded batch)


def mlp_kernel(x_ref, w1_ref, b1_ref, w2_ref, b2_ref, w3_ref, b3_ref, o_ref):
    # x_ref: (4, TB) bf16     weights: PyTorch (out, in) layout, bf16
    # biases: (out, 1) f32    o_ref: (1, TB) f32
    x = x_ref[...].astype(jnp.float32)        # (4, TB)
    w1 = w1_ref[...].astype(jnp.float32)      # (50, 4)

    # ---- Layer 1 on the VPU: K=4 unrolled broadcast multiply-adds ----------
    acc = w1[:, 0:1] * x[0:1, :]              # (50, 1) * (1, TB) -> (50, TB)
    for k in range(1, IN_F):
        acc = acc + w1[:, k : k + 1] * x[k : k + 1, :]
    h1 = jnp.maximum(acc + b1_ref[...], 0.0)                      # (50, TB) f32

    # ---- Layer 2 on the MXU (bf16 operands, f32 accumulation) --------------
    h2 = jnp.dot(w2_ref[...], h1.astype(jnp.bfloat16),
                 preferred_element_type=jnp.float32) + b2_ref[...]
    h2 = jnp.maximum(h2, 0.0)                                     # (50, TB) f32

    # ---- Layer 3 + Sigmoid (EUP) --------------------------------------------
    logits = jnp.dot(w3_ref[...], h2.astype(jnp.bfloat16),
                     preferred_element_type=jnp.float32) + b3_ref[...]
    o_ref[...] = jax.nn.sigmoid(logits)                           # (1, TB) f32


def net_forward(x, params, tile_b=TILE_B):
    """x: (B, 4) float32 -> (B, 1) float32 (same semantics as the PyTorch Net)."""
    w1, b1, w2, b2, w3, b3 = params          # PyTorch layout: w (out, in), b (out, 1)
    B = x.shape[0]

    # Clamp the tile to the 128-aligned batch (avoid over-padding tiny batches).
    b_aligned = 128 * pl.cdiv(B, 128)
    tile_b = min(tile_b, b_aligned)
    num_tiles = pl.cdiv(B, tile_b)
    Bp = num_tiles * tile_b

    # Wrapper-side layout plumbing: batch onto lanes, pad ragged tail, bf16 cast.
    x_t = jnp.pad(x.T.astype(jnp.bfloat16), ((0, 0), (0, Bp - B)))   # (4, Bp)
    w1b = w1.astype(jnp.bfloat16)
    w2b = w2.astype(jnp.bfloat16)
    w3b = w3.astype(jnp.bfloat16)

    out_t = pl.pallas_call(
        mlp_kernel,
        out_shape=jax.ShapeDtypeStruct((OUT_F, Bp), jnp.float32),
        grid_spec=pltpu.PrefetchScalarGridSpec(
            num_scalar_prefetch=0,
            grid=(num_tiles,),
            in_specs=[
                pl.BlockSpec((IN_F, tile_b), lambda i: (0, i)),   # x stream
                pl.BlockSpec((H1, IN_F), lambda i: (0, 0)),       # W1 (resident)
                pl.BlockSpec((H1, 1), lambda i: (0, 0)),          # b1 (resident)
                pl.BlockSpec((H2, H1), lambda i: (0, 0)),         # W2 (resident)
                pl.BlockSpec((H2, 1), lambda i: (0, 0)),          # b2 (resident)
                pl.BlockSpec((OUT_F, H2), lambda i: (0, 0)),      # W3 (resident)
                pl.BlockSpec((OUT_F, 1), lambda i: (0, 0)),       # b3 (resident)
            ],
            out_specs=pl.BlockSpec((OUT_F, tile_b), lambda i: (0, i)),
        ),
        compiler_params=pltpu.CompilerParams(
            dimension_semantics=("parallel",)),
    )(x_t, w1b, b1, w2b, b2, w3b, b3)

    return out_t[:, :B].T                    # (B, 1)


def init_params(key):
    """Deterministic init mimicking nn.Linear's uniform(-1/sqrt(fan_in), +).
    Weights kept in PyTorch (out_features, in_features) layout; biases (out, 1)."""
    def linear(key, fan_in, fan_out):
        kw, kb = jax.random.split(key)
        bound = 1.0 / (float(fan_in) ** 0.5)
        w = jax.random.uniform(kw, (fan_out, fan_in), jnp.float32, -bound, bound)
        b = jax.random.uniform(kb, (fan_out, 1), jnp.float32, -bound, bound)
        return w, b

    k1, k2, k3 = jax.random.split(key, 3)
    w1, b1 = linear(k1, IN_F, H1)
    w2, b2 = linear(k2, H1, H2)
    w3, b3 = linear(k3, H2, OUT_F)
    return (w1, b1, w2, b2, w3, b3)


if __name__ == "__main__":
    key = jax.random.PRNGKey(0)
    kx, kp = jax.random.split(key)

    # Small batch, deliberately NOT a multiple of 128 to exercise the
    # ragged-tail padding path.
    B = 200
    x = jax.random.normal(kx, (B, IN_F), dtype=jnp.float32)
    params = init_params(kp)

    out = net_forward(x, params)
    jax.block_until_ready(out)
    assert out.shape == (B, OUT_F)

    # Reference mirroring the kernel's bf16-input / f32-accumulate math.
    w1, b1, w2, b2, w3, b3 = params
    bf = lambda a: a.astype(jnp.bfloat16).astype(jnp.float32)
    h1 = jnp.maximum(bf(x) @ bf(w1).T + b1.T, 0.0)
    h2 = jnp.maximum(bf(h1) @ bf(w2).T + b2.T, 0.0)
    ref = jax.nn.sigmoid(bf(h2) @ bf(w3).T + b3.T)

    assert jnp.allclose(out, ref, atol=5e-3, rtol=5e-3), (
        float(jnp.max(jnp.abs(out - ref))))

    print("KERNEL_OK")
</pallas_src>

<mosaic_0001>
module attributes {stable_mosaic.version = 11 : i64} {
  func.func @mlp_kernel(%arg0: i32, %arg1: memref<4x256xbf16, #tpu.memory_space<vmem>>, %arg2: memref<50x4xbf16, #tpu.memory_space<vmem>>, %arg3: memref<50x1xf32, #tpu.memory_space<vmem>>, %arg4: memref<50x50xbf16, #tpu.memory_space<vmem>>, %arg5: memref<50x1xf32, #tpu.memory_space<vmem>>, %arg6: memref<1x50xbf16, #tpu.memory_space<vmem>>, %arg7: memref<1x1xf32, #tpu.memory_space<vmem>>, %arg8: memref<1x256xf32, #tpu.memory_space<vmem>>) attributes {dimension_semantics = [#tpu.dimension_semantics<parallel>], iteration_bounds = array<i64: 1>, scalar_prefetch = 0 : i64, scratch_operands = 0 : i64, tpu.core_type = #tpu.core_type<tc>, window_params = [{transform_indices = @transform_0, window_bounds = array<i64: 4, 256>}, {pipeline_mode = #tpu.pipeline_mode<synchronous>, transform_indices = @transform_1, window_bounds = array<i64: 50, 4>}, {pipeline_mode = #tpu.pipeline_mode<synchronous>, transform_indices = @transform_2, window_bounds = array<i64: 50, 1>}, {pipeline_mode = #tpu.pipeline_mode<synchronous>, transform_indices = @transform_3, window_bounds = array<i64: 50, 50>}, {pipeline_mode = #tpu.pipeline_mode<synchronous>, transform_indices = @transform_4, window_bounds = array<i64: 50, 1>}, {pipeline_mode = #tpu.pipeline_mode<synchronous>, transform_indices = @transform_5, window_bounds = array<i64: 1, 50>}, {pipeline_mode = #tpu.pipeline_mode<synchronous>, transform_indices = @transform_6, window_bounds = array<i64: 1, 1>}, {transform_indices = @transform_7, window_bounds = array<i64: 1, 256>}]} {
    %c0 = arith.constant 0 : index
    %c0_0 = arith.constant 0 : index
    %0 = vector.load %arg1[%c0, %c0_0] : memref<4x256xbf16, #tpu.memory_space<vmem>>, vector<4x256xbf16>
    %1 = arith.extf %0 : vector<4x256xbf16> to vector<4x256xf32>
    %c0_1 = arith.constant 0 : index
    %c0_2 = arith.constant 0 : index
    %2 = vector.load %arg2[%c0_1, %c0_2] : memref<50x4xbf16, #tpu.memory_space<vmem>>, vector<50x4xbf16>
    %3 = arith.extf %2 : vector<50x4xbf16> to vector<50x4xf32>
    %4 = vector.extract_strided_slice %3 {offsets = [0, 0], sizes = [50, 1], strides = [1, 1]} : vector<50x4xf32> to vector<50x1xf32>
    %5 = vector.extract_strided_slice %1 {offsets = [0, 0], sizes = [1, 256], strides = [1, 1]} : vector<4x256xf32> to vector<1x256xf32>
    %6 = vector.broadcast %4 : vector<50x1xf32> to vector<50x256xf32>
    %7 = vector.broadcast %5 : vector<1x256xf32> to vector<50x256xf32>
    %8 = arith.mulf %6, %7 : vector<50x256xf32>
    %9 = vector.extract_strided_slice %3 {offsets = [0, 1], sizes = [50, 1], strides = [1, 1]} : vector<50x4xf32> to vector<50x1xf32>
    %10 = vector.extract_strided_slice %1 {offsets = [1, 0], sizes = [1, 256], strides = [1, 1]} : vector<4x256xf32> to vector<1x256xf32>
    %11 = vector.broadcast %9 : vector<50x1xf32> to vector<50x256xf32>
    %12 = vector.broadcast %10 : vector<1x256xf32> to vector<50x256xf32>
    %13 = arith.mulf %11, %12 : vector<50x256xf32>
    %14 = arith.addf %8, %13 : vector<50x256xf32>
    %15 = vector.extract_strided_slice %3 {offsets = [0, 2], sizes = [50, 1], strides = [1, 1]} : vector<50x4xf32> to vector<50x1xf32>
    %16 = vector.extract_strided_slice %1 {offsets = [2, 0], sizes = [1, 256], strides = [1, 1]} : vector<4x256xf32> to vector<1x256xf32>
    %17 = vector.broadcast %15 : vector<50x1xf32> to vector<50x256xf32>
    %18 = vector.broadcast %16 : vector<1x256xf32> to vector<50x256xf32>
    %19 = arith.mulf %17, %18 : vector<50x256xf32>
    %20 = arith.addf %14, %19 : vector<50x256xf32>
    %21 = vector.extract_strided_slice %3 {offsets = [0, 3], sizes = [50, 1], strides = [1, 1]} : vector<50x4xf32> to vector<50x1xf32>
    %22 = vector.extract_strided_slice %1 {offsets = [3, 0], sizes = [1, 256], strides = [1, 1]} : vector<4x256xf32> to vector<1x256xf32>
    %23 = vector.broadcast %21 : vector<50x1xf32> to vector<50x256xf32>
    %24 = vector.broadcast %22 : vector<1x256xf32> to vector<50x256xf32>
    %25 = arith.mulf %23, %24 : vector<50x256xf32>
    %26 = arith.addf %20, %25 : vector<50x256xf32>
    %c0_3 = arith.constant 0 : index
    %c0_4 = arith.constant 0 : index
    %27 = vector.load %arg3[%c0_3, %c0_4] : memref<50x1xf32, #tpu.memory_space<vmem>>, vector<50x1xf32>
    %28 = vector.broadcast %27 : vector<50x1xf32> to vector<50x256xf32>
    %29 = arith.addf %26, %28 : vector<50x256xf32>
    %cst = arith.constant 0.000000e+00 : f32
    %30 = vector.broadcast %cst : f32 to vector<50x256xf32>
    %31 = arith.maximumf %29, %30 : vector<50x256xf32>
    %c0_5 = arith.constant 0 : index
    %c0_6 = arith.constant 0 : index
    %32 = vector.load %arg4[%c0_5, %c0_6] : memref<50x50xbf16, #tpu.memory_space<vmem>>, vector<50x50xbf16>
    %33 = arith.truncf %31 : vector<50x256xf32> to vector<50x256xbf16>
    %cst_7 = arith.constant dense<0.000000e+00> : vector<50x256xf32>
    %34 = tpu.matmul %32, %33, %cst_7 {dimension_numbers = #tpu.dot_dimension_numbers<[1], [0], [0], [1], [0, 0, 1, 1], [], []>} : vector<50x50xbf16>, vector<50x256xbf16>, vector<50x256xf32> -> vector<50x256xf32>
    %c0_8 = arith.constant 0 : index
    %c0_9 = arith.constant 0 : index
    %35 = vector.load %arg5[%c0_8, %c0_9] : memref<50x1xf32, #tpu.memory_space<vmem>>, vector<50x1xf32>
    %36 = vector.broadcast %35 : vector<50x1xf32> to vector<50x256xf32>
    %37 = arith.addf %34, %36 : vector<50x256xf32>
    %cst_10 = arith.constant 0.000000e+00 : f32
    %38 = vector.broadcast %cst_10 : f32 to vector<50x256xf32>
    %39 = arith.maximumf %37, %38 : vector<50x256xf32>
    %c0_11 = arith.constant 0 : index
    %c0_12 = arith.constant 0 : index
    %40 = vector.load %arg6[%c0_11, %c0_12] : memref<1x50xbf16, #tpu.memory_space<vmem>>, vector<1x50xbf16>
    %41 = arith.truncf %39 : vector<50x256xf32> to vector<50x256xbf16>
    %cst_13 = arith.constant dense<0.000000e+00> : vector<1x256xf32>
    %42 = tpu.matmul %40, %41, %cst_13 {dimension_numbers = #tpu.dot_dimension_numbers<[1], [0], [0], [1], [0, 0, 1, 1], [], []>} : vector<1x50xbf16>, vector<50x256xbf16>, vector<1x256xf32> -> vector<1x256xf32>
    %c0_14 = arith.constant 0 : index
    %c0_15 = arith.constant 0 : index
    %43 = vector.load %arg7[%c0_14, %c0_15] : memref<1x1xf32, #tpu.memory_space<vmem>>, vector<1x1xf32>
    %44 = vector.broadcast %43 : vector<1x1xf32> to vector<1x256xf32>
    %45 = arith.addf %42, %44 : vector<1x256xf32>
    %46 = arith.negf %45 : vector<1x256xf32>
    %47 = math.exp %46 : vector<1x256xf32>
    %cst_16 = arith.constant 1.000000e+00 : f32
    %48 = vector.broadcast %cst_16 : f32 to vector<1x256xf32>
    %49 = arith.addf %48, %47 : vector<1x256xf32>
    %50 = arith.divf %48, %49 : vector<1x256xf32>
    %c0_17 = arith.constant 0 : index
    %c0_18 = arith.constant 0 : index
    %51 = vector.load %arg8[%c0_17, %c0_18] : memref<1x256xf32, #tpu.memory_space<vmem>>, vector<1x256xf32>
    tpu.vector_store %arg8[%c0_17, %c0_18], %50 {strides = array<i32>} : memref<1x256xf32, #tpu.memory_space<vmem>>, vector<1x256xf32>,
    return
  }
  func.func @transform_0(%arg0: i32) -> (i32, i32) {
    %c0_i32 = arith.constant 0 : i32
    %c0_i32_0 = arith.constant 0 : i32
    return %c0_i32, %arg0 : i32, i32
  }
  func.func @transform_1(%arg0: i32) -> (i32, i32) {
    %c0_i32 = arith.constant 0 : i32
    %c0_i32_0 = arith.constant 0 : i32
    %c0_i32_1 = arith.constant 0 : i32
    return %c0_i32, %c0_i32_0 : i32, i32
  }
  func.func @transform_2(%arg0: i32) -> (i32, i32) {
    %c0_i32 = arith.constant 0 : i32
    %c0_i32_0 = arith.constant 0 : i32
    %c0_i32_1 = arith.constant 0 : i32
    return %c0_i32, %c0_i32_0 : i32, i32
  }
  func.func @transform_3(%arg0: i32) -> (i32, i32) {
    %c0_i32 = arith.constant 0 : i32
    %c0_i32_0 = arith.constant 0 : i32
    %c0_i32_1 = arith.constant 0 : i32
    return %c0_i32, %c0_i32_0 : i32, i32
  }
  func.func @transform_4(%arg0: i32) -> (i32, i32) {
    %c0_i32 = arith.constant 0 : i32
    %c0_i32_0 = arith.constant 0 : i32
    %c0_i32_1 = arith.constant 0 : i32
    return %c0_i32, %c0_i32_0 : i32, i32
  }
  func.func @transform_5(%arg0: i32) -> (i32, i32) {
    %c0_i32 = arith.constant 0 : i32
    %c0_i32_0 = arith.constant 0 : i32
    %c0_i32_1 = arith.constant 0 : i32
    return %c0_i32, %c0_i32_0 : i32, i32
  }
  func.func @transform_6(%arg0: i32) -> (i32, i32) {
    %c0_i32 = arith.constant 0 : i32
    %c0_i32_0 = arith.constant 0 : i32
    %c0_i32_1 = arith.constant 0 : i32
    return %c0_i32, %c0_i32_0 : i32, i32
  }
  func.func @transform_7(%arg0: i32) -> (i32, i32) {
    %c0_i32 = arith.constant 0 : i32
    %c0_i32_0 = arith.constant 0 : i32
    return %c0_i32, %arg0 : i32, i32
  }
}

</mosaic_0001>

<llo_original>
// kernel: tpu_custom_call.1
$region0: #{tpu_custom_call.1}
  #allocation0 [shape = 'u32[]', space=smem, size = 0x4, offset = 0x4, fixed_abs, tag = 'smem constant byte address 0x4 - core index']
  #allocation1 [shape = 'u32[144,128]{1,0:T(1,128)}', space=vmem, size = 0x12000, scoped, tag = 'internal scratch']
  #allocation2 [shape = 'f32[1,1]{1,0:T(1,128)S(1)}', space=vmem, size = 0x200, scoped, tag = 'scoped memory for tpu_custom_call.1']
  %s0 = inlined_call_operand.vmem [shape: bf16[4,256], index: 0, kind: input, shape index: {}]
  %s1 = inlined_call_operand.vmem [shape: bf16[50,4], index: 1, kind: input, shape index: {}]
  %s2 = inlined_call_operand.vmem [shape: f32[50,1], index: 2, kind: input, shape index: {}]
  %s3 = inlined_call_operand.vmem [shape: bf16[50,50], index: 3, kind: input, shape index: {}]
  %s4 = inlined_call_operand.vmem [shape: f32[50,1], index: 4, kind: input, shape index: {}]
  %s5 = inlined_call_operand.vmem [shape: bf16[1,50], index: 5, kind: input, shape index: {}]
  %s6 = inlined_call_operand.<no memory space> [shape: f32[1,1], index: 6, kind: input, shape index: {}]
  %s7 = inlined_call_operand.hbm [shape: f32[1,256], index: 7, kind: output, shape index: {}]
  %s8 = sld [smem:[#allocation0]]
  $region38: #{tpu_custom_call.1} parent=0
    _
  %s10 = ssub.s32 1, %s8
  %s11 = scalar_select 0, %s10, %s8
  %v12 = vstv %s6
  %13 = vst [vmem:[#allocation2] sm:$0x1] %v12
  $region1: #{tpu_custom_call.1} parent=0
    #allocation3 [shape = 'u8[1024]{0}', space=vmem, size = 0x400, scoped, tag = 'output window, operand 0, single buffered']
    #allocation4 [shape = 's32[1]{0}', space=sflag, size = 0x4, scoped, tag = 'scoped memory for tpu_custom_call.1']
    %14 = vsyncpa [#allocation4], 0
    // Predicated region
    $region2: #{tpu_custom_call.1} parent=1 // pred_check
      _
    $region3: #{tpu_custom_call.1} parent=1 // pred_check_branch
      %16 = sbr.rel (0) target = $region5
    $region4: #{tpu_custom_call.1} parent=1 // pred_region
      _
    $region5: #{tpu_custom_call.1} parent=1 // pred_fallthru
      _
    // Predicated region
    $region6: #{tpu_custom_call.1} parent=1 // pred_check
      _
    $region7: #{tpu_custom_call.1} parent=1 // pred_check_branch
      %18 = sbr.rel (0) target = $region9
    $region8: #{tpu_custom_call.1} parent=1 // pred_region
      _
    $region9: #{tpu_custom_call.1} parent=1 // pred_fallthru
      _
    // Predicated region
    $region10: #{tpu_custom_call.1} parent=1 // pred_check
      _
    $region11: #{tpu_custom_call.1} parent=1 // pred_check_branch
      %20 = sbr.rel (0) target = $region13
    $region12: #{tpu_custom_call.1} parent=1 // pred_region
      _
    $region13: #{tpu_custom_call.1} parent=1 // pred_fallthru
      _
    // Predicated region
    $region14: #{tpu_custom_call.1} parent=1 // pred_check
      _
    $region15: #{tpu_custom_call.1} parent=1 // pred_check_branch
      %22 = sbr.rel (0) target = $region17
    $region16: #{tpu_custom_call.1} parent=1 // pred_region
      _
    $region17: #{tpu_custom_call.1} parent=1 // pred_fallthru
      _
    // Predicated region
    $region18: #{tpu_custom_call.1} parent=1 // pred_check
      _
    $region19: #{tpu_custom_call.1} parent=1 // pred_check_branch
      %24 = sbr.rel (0) target = $region21
    $region20: #{tpu_custom_call.1} parent=1 // pred_region
      _
    $region21: #{tpu_custom_call.1} parent=1 // pred_fallthru
      _
    // Predicated region
    $region22: #{tpu_custom_call.1} parent=1 // pred_check
      _
    $region23: #{tpu_custom_call.1} parent=1 // pred_check_branch
      %26 = sbr.rel (0) target = $region25
    $region24: #{tpu_custom_call.1} parent=1 // pred_region
      _
    $region25: #{tpu_custom_call.1} parent=1 // pred_fallthru
      _
    // Predicated region
    $region26: #{tpu_custom_call.1} parent=1 // pred_check
      _
    $region27: #{tpu_custom_call.1} parent=1 // pred_check_branch
      %28 = sbr.rel (0) target = $region29
    $region28: #{tpu_custom_call.1} parent=1 // pred_region
      _
    $region29: #{tpu_custom_call.1} parent=1 // pred_fallthru
      _
    %v30 = vld [vmem:[%s0] sm:$0xf]
    %v31 = vunpack.c.l.bf16 %v30
    %v32 = vld [vmem:[%s1] sm:$0xf]
    %v33 = vld [vmem:[%s1 + $0x4] sm:$0xf]
    %v34 = vld [vmem:[%s1 + $0x8] sm:$0xf]
    %v35 = vld [vmem:[%s1 + $0xc] sm:$0xf]
    %v36 = vld [vmem:[%s1 + $0x10] sm:$0xf]
    %v37 = vld [vmem:[%s1 + $0x14] sm:$0xf]
    %v38 = vld [vmem:[%s1 + $0x18] sm:$0x1]
    %v39 = vunpack.c.l.bf16 %v32
    %v40 = vunpack.c.l.bf16 %v33
    %v41 = vunpack.c.l.bf16 %v34
    %v42 = vunpack.c.l.bf16 %v35
    %v43 = vunpack.c.l.bf16 %v36
    %v44 = vunpack.c.l.bf16 %v37
    %v45 = vunpack.c.l.bf16 %v38
    %47 = vset.pattern.permute.xlu0 0
    %48 = vperm.xlu0 %47, %v39
    %v49 = vpop.permute.xlu0 %48
    %52 = vset.pattern.permute.xlu0 0
    %53 = vperm.xlu0 %52, %v40
    %v54 = vpop.permute.xlu0 %53
    %57 = vset.pattern.permute.xlu0 0
    %58 = vperm.xlu0 %57, %v41
    %v59 = vpop.permute.xlu0 %58
    %62 = vset.pattern.permute.xlu0 0
    %63 = vperm.xlu0 %62, %v42
    %v64 = vpop.permute.xlu0 %63
    %67 = vset.pattern.permute.xlu0 0
    %68 = vperm.xlu0 %67, %v43
    %v69 = vpop.permute.xlu0 %68
    %72 = vset.pattern.permute.xlu0 0
    %73 = vperm.xlu0 %72, %v44
    %v74 = vpop.permute.xlu0 %73
    %77 = vset.pattern.permute.xlu0 0
    %78 = vperm.xlu0 %77, %v45
    %v79 = vpop.permute.xlu0 %78
    %v82 = vlaneseq
    %v83 = vshrl.u32 %v82, 7
    %v84 = vsub.s32 0, %v83
    %v85 = vrot.slane %v31, %v84
    %v86 = vlaneseq
    %v87 = vshrl.u32 %v86, 7
    %v88 = vsub.s32 4, %v87
    %v89 = vrot.slane %v31, %v88
    %v92 = vlaneseq
    %v93 = vshrl.u32 %v92, 7
    %v94 = vsub.s32 0, %v93
    %v95 = vrot.slane %v85, %v94
    %v96 = vlaneseq
    %v97 = vshrl.u32 %v96, 7
    %v98 = vsub.s32 0, %v97
    %v99 = vrot.slane %v89, %v98
    %v100 = vmul.f32 %v49, %v95
    %v101 = vmul.f32 %v49, %v99
    %v102 = vmul.f32 %v54, %v95
    %v103 = vmul.f32 %v54, %v99
    %v104 = vmul.f32 %v59, %v95
    %v105 = vmul.f32 %v59, %v99
    %v106 = vmul.f32 %v64, %v95
    %v107 = vmul.f32 %v64, %v99
    %v108 = vmul.f32 %v69, %v95
    %v109 = vmul.f32 %v69, %v99
    %v110 = vmul.f32 %v74, %v95
    %v111 = vmul.f32 %v74, %v99
    %v112 = vmul.f32 %v79, %v95
    %v113 = vmul.f32 %v79, %v99
    %114 = vset.pattern.permute.xlu0 1
    %115 = vperm.xlu0 %114, %v39
    %v116 = vpop.permute.xlu0 %115
    %118 = vset.pattern.permute.xlu0 1
    %119 = vperm.xlu0 %118, %v40
    %v120 = vpop.permute.xlu0 %119
    %122 = vset.pattern.permute.xlu0 1
    %123 = vperm.xlu0 %122, %v41
    %v124 = vpop.permute.xlu0 %123
    %126 = vset.pattern.permute.xlu0 1
    %127 = vperm.xlu0 %126, %v42
    %v128 = vpop.permute.xlu0 %127
    %130 = vset.pattern.permute.xlu0 1
    %131 = vperm.xlu0 %130, %v43
    %v132 = vpop.permute.xlu0 %131
    %134 = vset.pattern.permute.xlu0 1
    %135 = vperm.xlu0 %134, %v44
    %v136 = vpop.permute.xlu0 %135
    %138 = vset.pattern.permute.xlu0 1
    %139 = vperm.xlu0 %138, %v45
    %v140 = vpop.permute.xlu0 %139
    %v142 = vlaneseq
    %v143 = vshrl.u32 %v142, 7
    %v144 = vsub.s32 1, %v143
    %v145 = vrot.slane %v31, %v144
    %v146 = vlaneseq
    %v147 = vshrl.u32 %v146, 7
    %v148 = vsub.s32 5, %v147
    %v149 = vrot.slane %v31, %v148
    %v152 = vlaneseq
    %v153 = vshrl.u32 %v152, 7
    %v154 = vsub.s32 1, %v153
    %v155 = vrot.slane %v145, %v154
    %v156 = vlaneseq
    %v157 = vshrl.u32 %v156, 7
    %v158 = vsub.s32 1, %v157
    %v159 = vrot.slane %v149, %v158
    %v160 = vmul.f32 %v116, %v155
    %v161 = vmul.f32 %v116, %v159
    %v162 = vmul.f32 %v120, %v155
    %v163 = vmul.f32 %v120, %v159
    %v164 = vmul.f32 %v124, %v155
    %v165 = vmul.f32 %v124, %v159
    %v166 = vmul.f32 %v128, %v155
    %v167 = vmul.f32 %v128, %v159
    %v168 = vmul.f32 %v132, %v155
    %v169 = vmul.f32 %v132, %v159
    %v170 = vmul.f32 %v136, %v155
    %v171 = vmul.f32 %v136, %v159
    %v172 = vmul.f32 %v140, %v155
    %v173 = vmul.f32 %v140, %v159
    %v174 = vadd.f32 %v100, %v160
    %v175 = vadd.f32 %v101, %v161
    %v176 = vadd.f32 %v102, %v162
    %v177 = vadd.f32 %v103, %v163
    %v178 = vadd.f32 %v104, %v164
    %v179 = vadd.f32 %v105, %v165
    %v180 = vadd.f32 %v106, %v166
    %v181 = vadd.f32 %v107, %v167
    %v182 = vadd.f32 %v108, %v168
    %v183 = vadd.f32 %v109, %v169
    %v184 = vadd.f32 %v110, %v170
    %v185 = vadd.f32 %v111, %v171
    %v186 = vadd.f32 %v112, %v172
    %v187 = vadd.f32 %v113, %v173
    %188 = vset.pattern.permute.xlu0 2
    %189 = vperm.xlu0 %188, %v39
    %v190 = vpop.permute.xlu0 %189
    %192 = vset.pattern.permute.xlu0 2
    %193 = vperm.xlu0 %192, %v40
    %v194 = vpop.permute.xlu0 %193
    %196 = vset.pattern.permute.xlu0 2
    %197 = vperm.xlu0 %196, %v41
    %v198 = vpop.permute.xlu0 %197
    %200 = vset.pattern.permute.xlu0 2
    %201 = vperm.xlu0 %200, %v42
    %v202 = vpop.permute.xlu0 %201
    %204 = vset.pattern.permute.xlu0 2
    %205 = vperm.xlu0 %204, %v43
    %v206 = vpop.permute.xlu0 %205
    %208 = vset.pattern.permute.xlu0 2
    %209 = vperm.xlu0 %208, %v44
    %v210 = vpop.permute.xlu0 %209
    %212 = vset.pattern.permute.xlu0 2
    %213 = vperm.xlu0 %212, %v45
    %v214 = vpop.permute.xlu0 %213
    %v216 = vlaneseq
    %v217 = vshrl.u32 %v216, 7
    %v218 = vsub.s32 2, %v217
    %v219 = vrot.slane %v31, %v218
    %v220 = vlaneseq
    %v221 = vshrl.u32 %v220, 7
    %v222 = vsub.s32 6, %v221
    %v223 = vrot.slane %v31, %v222
    %v226 = vlaneseq
    %v227 = vshrl.u32 %v226, 7
    %v228 = vsub.s32 2, %v227
    %v229 = vrot.slane %v219, %v228
    %v230 = vlaneseq
    %v231 = vshrl.u32 %v230, 7
    %v232 = vsub.s32 2, %v231
    %v233 = vrot.slane %v223, %v232
    %v234 = vmul.f32 %v190, %v229
    %v235 = vmul.f32 %v190, %v233
    %v236 = vmul.f32 %v194, %v229
    %v237 = vmul.f32 %v194, %v233
    %v238 = vmul.f32 %v198, %v229
    %v239 = vmul.f32 %v198, %v233
    %v240 = vmul.f32 %v202, %v229
    %v241 = vmul.f32 %v202, %v233
    %v242 = vmul.f32 %v206, %v229
    %v243 = vmul.f32 %v206, %v233
    %v244 = vmul.f32 %v210, %v229
    %v245 = vmul.f32 %v210, %v233
    %v246 = vmul.f32 %v214, %v229
    %v247 = vmul.f32 %v214, %v233
    %v248 = vadd.f32 %v174, %v234
    %v249 = vadd.f32 %v175, %v235
    %v250 = vadd.f32 %v176, %v236
    %v251 = vadd.f32 %v177, %v237
    %v252 = vadd.f32 %v178, %v238
    %v253 = vadd.f32 %v179, %v239
    %v254 = vadd.f32 %v180, %v240
    %v255 = vadd.f32 %v181, %v241
    %v256 = vadd.f32 %v182, %v242
    %v257 = vadd.f32 %v183, %v243
    %v258 = vadd.f32 %v184, %v244
    %v259 = vadd.f32 %v185, %v245
    %v260 = vadd.f32 %v186, %v246
    %v261 = vadd.f32 %v187, %v247
    %262 = vset.pattern.permute.xlu0 3
    %263 = vperm.xlu0 %262, %v39
    %v264 = vpop.permute.xlu0 %263
    %266 = vset.pattern.permute.xlu0 3
    %267 = vperm.xlu0 %266, %v40
    %v268 = vpop.permute.xlu0 %267
    %270 = vset.pattern.permute.xlu0 3
    %271 = vperm.xlu0 %270, %v41
    %v272 = vpop.permute.xlu0 %271
    %274 = vset.pattern.permute.xlu0 3
    %275 = vperm.xlu0 %274, %v42
    %v276 = vpop.permute.xlu0 %275
    %278 = vset.pattern.permute.xlu0 3
    %279 = vperm.xlu0 %278, %v43
    %v280 = vpop.permute.xlu0 %279
    %282 = vset.pattern.permute.xlu0 3
    %283 = vperm.xlu0 %282, %v44
    %v284 = vpop.permute.xlu0 %283
    %286 = vset.pattern.permute.xlu0 3
    %287 = vperm.xlu0 %286, %v45
    %v288 = vpop.permute.xlu0 %287
    %v290 = vlaneseq
    %v291 = vshrl.u32 %v290, 7
    %v292 = vsub.s32 3, %v291
    %v293 = vrot.slane %v31, %v292
    %v294 = vlaneseq
    %v295 = vshrl.u32 %v294, 7
    %v296 = vsub.s32 7, %v295
    %v297 = vrot.slane %v31, %v296
    %v300 = vlaneseq
    %v301 = vshrl.u32 %v300, 7
    %v302 = vsub.s32 3, %v301
    %v303 = vrot.slane %v293, %v302
    %v304 = vlaneseq
    %v305 = vshrl.u32 %v304, 7
    %v306 = vsub.s32 3, %v305
    %v307 = vrot.slane %v297, %v306
    %v308 = vmul.f32 %v264, %v303
    %v309 = vmul.f32 %v264, %v307
    %v310 = vmul.f32 %v268, %v303
    %v311 = vmul.f32 %v268, %v307
    %v312 = vmul.f32 %v272, %v303
    %v313 = vmul.f32 %v272, %v307
    %v314 = vmul.f32 %v276, %v303
    %v315 = vmul.f32 %v276, %v307
    %v316 = vmul.f32 %v280, %v303
    %v317 = vmul.f32 %v280, %v307
    %v318 = vmul.f32 %v284, %v303
    %v319 = vmul.f32 %v284, %v307
    %v320 = vmul.f32 %v288, %v303
    %v321 = vmul.f32 %v288, %v307
    %v322 = vadd.f32 %v248, %v308
    %v323 = vadd.f32 %v249, %v309
    %v324 = vadd.f32 %v250, %v310
    %v325 = vadd.f32 %v251, %v311
    %v326 = vadd.f32 %v252, %v312
    %v327 = vadd.f32 %v253, %v313
    %v328 = vadd.f32 %v254, %v314
    %v329 = vadd.f32 %v255, %v315
    %v330 = vadd.f32 %v256, %v316
    %v331 = vadd.f32 %v257, %v317
    %v332 = vadd.f32 %v258, %v318
    %v333 = vadd.f32 %v259, %v319
    %v334 = vadd.f32 %v260, %v320
    %v335 = vadd.f32 %v261, %v321
    %v336 = vld [vmem:[%s2] sm:$0xff]
    %v337 = vld [vmem:[%s2 + $0x8] sm:$0xff]
    %v338 = vld [vmem:[%s2 + $0x10] sm:$0xff]
    %v339 = vld [vmem:[%s2 + $0x18] sm:$0xff]
    %v340 = vld [vmem:[%s2 + $0x20] sm:$0xff]
    %v341 = vld [vmem:[%s2 + $0x28] sm:$0xff]
    %v342 = vld [vmem:[%s2 + $0x30] sm:$0x3]
    %344 = vset.pattern.permute.xlu0 0
    %345 = vperm.xlu0 %344, %v336
    %v346 = vpop.permute.xlu0 %345
    %349 = vset.pattern.permute.xlu0 0
    %350 = vperm.xlu0 %349, %v337
    %v351 = vpop.permute.xlu0 %350
    %354 = vset.pattern.permute.xlu0 0
    %355 = vperm.xlu0 %354, %v338
    %v356 = vpop.permute.xlu0 %355
    %359 = vset.pattern.permute.xlu0 0
    %360 = vperm.xlu0 %359, %v339
    %v361 = vpop.permute.xlu0 %360
    %364 = vset.pattern.permute.xlu0 0
    %365 = vperm.xlu0 %364, %v340
    %v366 = vpop.permute.xlu0 %365
    %369 = vset.pattern.permute.xlu0 0
    %370 = vperm.xlu0 %369, %v341
    %v371 = vpop.permute.xlu0 %370
    %374 = vset.pattern.permute.xlu0 0
    %375 = vperm.xlu0 %374, %v342
    %v376 = vpop.permute.xlu0 %375
    %v378 = vadd.f32 %v322, %v346
    %v379 = vadd.f32 %v323, %v346
    %v380 = vadd.f32 %v324, %v351
    %v381 = vadd.f32 %v325, %v351
    %v382 = vadd.f32 %v326, %v356
    %v383 = vadd.f32 %v327, %v356
    %v384 = vadd.f32 %v328, %v361
    %v385 = vadd.f32 %v329, %v361
    %v386 = vadd.f32 %v330, %v366
    %v387 = vadd.f32 %v331, %v366
    %v388 = vadd.f32 %v332, %v371
    %v389 = vadd.f32 %v333, %v371
    %v390 = vadd.f32 %v334, %v376
    %v391 = vadd.f32 %v335, %v376
    %v392 = vmax.f32 %v378, 0.0
    %v393 = vmax.f32 %v379, 0.0
    %v394 = vmax.f32 %v380, 0.0
    %v395 = vmax.f32 %v381, 0.0
    %v396 = vmax.f32 %v382, 0.0
    %v397 = vmax.f32 %v383, 0.0
    %v398 = vmax.f32 %v384, 0.0
    %v399 = vmax.f32 %v385, 0.0
    %v400 = vmax.f32 %v386, 0.0
    %v401 = vmax.f32 %v387, 0.0
    %v402 = vmax.f32 %v388, 0.0
    %v403 = vmax.f32 %v389, 0.0
    %v404 = vmax.f32 %v390, 0.0
    %v405 = vmax.f32 %v391, 0.0
    %v406 = vld [vmem:[%s3] sm:$0xf]
    %v407 = vld [vmem:[%s3 + $0x4] sm:$0xf]
    %v408 = vld [vmem:[%s3 + $0x8] sm:$0xf]
    %v409 = vld [vmem:[%s3 + $0xc] sm:$0xf]
    %v410 = vld [vmem:[%s3 + $0x10] sm:$0xf]
    %v411 = vld [vmem:[%s3 + $0x14] sm:$0xf]
    %v412 = vld [vmem:[%s3 + $0x18] sm:$0x1]
    %v413 = vpack.c.bf16 %v394, %v392
    %v414 = vpack.c.bf16 %v395, %v393
    %v415 = vpack.c.bf16 %v398, %v396
    %v416 = vpack.c.bf16 %v399, %v397
    %v417 = vpack.c.bf16 %v402, %v400
    %v418 = vpack.c.bf16 %v403, %v401
    %v419 = vpack.c.bf16 %v404, %v404
    %v420 = vpack.c.bf16 %v405, %v405
    %v421 = vld [vmem:[%s4] sm:$0xff]
    %v422 = vld [vmem:[%s4 + $0x8] sm:$0xff]
    %v423 = vld [vmem:[%s4 + $0x10] sm:$0xff]
    %v424 = vld [vmem:[%s4 + $0x18] sm:$0xff]
    %v425 = vld [vmem:[%s4 + $0x20] sm:$0xff]
    %v426 = vld [vmem:[%s4 + $0x28] sm:$0xff]
    %v427 = vld [vmem:[%s4 + $0x30] sm:$0x3]
    %429 = vset.pattern.permute.xlu0 0
    %430 = vperm.xlu0 %429, %v421
    %v431 = vpop.permute.xlu0 %430
    %434 = vset.pattern.permute.xlu0 0
    %435 = vperm.xlu0 %434, %v422
    %v436 = vpop.permute.xlu0 %435
    %439 = vset.pattern.permute.xlu0 0
    %440 = vperm.xlu0 %439, %v423
    %v441 = vpop.permute.xlu0 %440
    %444 = vset.pattern.permute.xlu0 0
    %445 = vperm.xlu0 %444, %v424
    %v446 = vpop.permute.xlu0 %445
    %449 = vset.pattern.permute.xlu0 0
    %450 = vperm.xlu0 %449, %v425
    %v451 = vpop.permute.xlu0 %450
    %454 = vset.pattern.permute.xlu0 0
    %455 = vperm.xlu0 %454, %v426
    %v456 = vpop.permute.xlu0 %455
    %459 = vset.pattern.permute.xlu0 0
    %460 = vperm.xlu0 %459, %v427
    %v461 = vpop.permute.xlu0 %460
    %v470 = vunpack.c.l.b16 %v406
    %v471 = vunpack.c.l.b16 %v407
    %v472 = vunpack.c.l.b16 %v408
    %v473 = vunpack.c.l.b16 %v409
    %v474 = vunpack.c.l.b16 %v410
    %v475 = vunpack.c.l.b16 %v411
    %v476 = vunpack.c.l.b16 %v412
    %v477 = vpack.c.b16 %v471, %v470
    %v478 = vpack.c.b16 %v473, %v472
    %v479 = vpack.c.b16 %v475, %v474
    %v480 = vpack.c.b16 %v476, %v476
    %vm481 = vcmask 408576
    %v483 = vsel %vm481, %v477, 0
    %v486 = vsel %vm481, %v478, 0
    %v489 = vsel %vm481, %v479, 0
    %v492 = vsel %vm481, %v480, 0
    %vm494 = vcmask 1040384
    %v496 = vsel %vm494, %v419, 0
    %v499 = vsel %vm494, %v420, 0
    %501 = vmatprep.subr.bf16.mxu0 %v414
    %502 = vmatpush1.bf16.msra.mxu0 %v413
    %503 = vmatprep.subr.bf16.mxu0 %v416
    %504 = vmatpush1.bf16.msra.mxu0 %v415
    %505 = vmatprep.subr.bf16.mxu0 %v418
    %506 = vmatpush1.bf16.msra.mxu0 %v417
    %507 = vmatprep.subr.bf16.mxu0 %v499
    %508 = vmatpush1.bf16.msra.mxu0 %v496
    %509 = vmatprep.subr.bf16.mxu0 0
    %510 = vmatpush1.bf16.msra.mxu0 0
    %511 = vmatprep.subr.bf16.mxu0 0
    %512 = vmatpush1.bf16.msra.mxu0 0
    %513 = vmatprep.subr.bf16.mxu0 0
    %514 = vmatpush1.bf16.msra.mxu0 0
    %515 = vmatprep.subr.bf16.mxu0 0
    %516 = vmatpush1.bf16.msra.mxu0 0
    %517 = vmatprep.subr.bf16.mxu0 0
    %518 = vmatpush1.bf16.msra.mxu0 0
    %519 = vmatprep.subr.bf16.mxu0 0
    %520 = vmatpush1.bf16.msra.mxu0 0
    %521 = vmatprep.subr.bf16.mxu0 0
    %522 = vmatpush1.bf16.msra.mxu0 0
    %523 = vmatprep.subr.bf16.mxu0 0
    %524 = vmatpush1.bf16.msra.mxu0 0
    %525 = vmatprep.subr.bf16.mxu0 0
    %526 = vmatpush1.bf16.msra.mxu0 0
    %527 = vmatprep.subr.bf16.mxu0 0
    %528 = vmatpush1.bf16.msra.mxu0 0
    %529 = vmatprep.subr.bf16.mxu0 0
    %530 = vmatpush1.bf16.msra.mxu0 0
    %531 = vmatprep.subr.bf16.mxu0 0
    %532 = vmatpush1.bf16.msra.mxu0 0
    %533 = vmatprep.mubr.bf16.mxu0 0
    %534 = vmatmul.mubr.bf16.gmra.mrb[0].mxu0 %v483
    %v535 = vpop.f32.mrb[0].mxu0
    %v536 = vadd.f32 %v431, %v535
    %v537 = vpop.f32.mrb[0].mxu0
    %v538 = vadd.f32 %v431, %v537
    %v539 = vpop.f32.mrb[0].mxu0
    %v540 = vadd.f32 %v436, %v539
    %v541 = vpop.f32.mrb[0].mxu0
    %v542 = vadd.f32 %v436, %v541
    %543 = vmatprep.mubr.bf16.mxu0 0
    %544 = vmatmul.mubr.bf16.gmra.mrb[0].mxu0 %v486
    %v545 = vpop.f32.mrb[0].mxu0
    %v546 = vadd.f32 %v441, %v545
    %v547 = vpop.f32.mrb[0].mxu0
    %v548 = vadd.f32 %v441, %v547
    %v549 = vpop.f32.mrb[0].mxu0
    %v550 = vadd.f32 %v446, %v549
    %v551 = vpop.f32.mrb[0].mxu0
    %v552 = vadd.f32 %v446, %v551
    %553 = vmatprep.mubr.bf16.mxu0 0
    %554 = vmatmul.mubr.bf16.gmra.mrb[0].mxu0 %v489
    %v555 = vpop.f32.mrb[0].mxu0
    %v556 = vadd.f32 %v451, %v555
    %v557 = vpop.f32.mrb[0].mxu0
    %v558 = vadd.f32 %v451, %v557
    %v559 = vpop.f32.mrb[0].mxu0
    %v560 = vadd.f32 %v456, %v559
    %v561 = vpop.f32.mrb[0].mxu0
    %v562 = vadd.f32 %v456, %v561
    %563 = vmatprep.mubr.bf16.mxu0 0
    %564 = vmatmul.mubr.bf16.gmra.mrb[0].mxu0 %v492
    %v565 = vpop.f32.mrb[0].mxu0
    %v566 = vadd.f32 %v461, %v565
    %v567 = vpop.f32.mrb[0].mxu0
    %v568 = vadd.f32 %v461, %v567
    %v569 = vpop.f32.mrb[0].mxu0
    %v570 = vpop.f32.mrb[0].mxu0
    %571 = vdwg.mxu0
    %v572 = vmax.f32 %v536, 0.0
    %v573 = vmax.f32 %v538, 0.0
    %v574 = vmax.f32 %v540, 0.0
    %v575 = vmax.f32 %v542, 0.0
    %v576 = vmax.f32 %v546, 0.0
    %v577 = vmax.f32 %v548, 0.0
    %v578 = vmax.f32 %v550, 0.0
    %v579 = vmax.f32 %v552, 0.0
    %v580 = vmax.f32 %v556, 0.0
    %v581 = vmax.f32 %v558, 0.0
    %v582 = vmax.f32 %v560, 0.0
    %v583 = vmax.f32 %v562, 0.0
    %v584 = vmax.f32 %v566, 0.0
    %v585 = vmax.f32 %v568, 0.0
    %v586 = vld [vmem:[%s5] sm:$0x1]
    %v587 = vpack.c.bf16 %v574, %v572
    %v588 = vpack.c.bf16 %v575, %v573
    %v589 = vpack.c.bf16 %v578, %v576
    %v590 = vpack.c.bf16 %v579, %v577
    %v591 = vpack.c.bf16 %v582, %v580
    %v592 = vpack.c.bf16 %v583, %v581
    %v593 = vpack.c.bf16 %v584, %v584
    %v594 = vpack.c.bf16 %v585, %v585
    %v595 = vld [vmem:[#allocation2] sm:$0x1]
    %597 = vset.pattern.permute.xlu0 0
    %598 = vperm.xlu0 %597, %v595
    %v599 = vpop.permute.xlu0 %598
    %v601 = vlaneseq
    %v602 = vshrl.u32 %v601, 7
    %v603 = vsub.s32 0, %v602
    %v604 = vrot.slane %v599, %v603
    %v606 = vsel %vm481, %v586, 0
    %v609 = vsel %vm494, %v593, 0
    %v612 = vsel %vm494, %v594, 0
    %614 = vmatprep.subr.bf16.mxu0 %v588
    %615 = vmatpush1.bf16.msra.mxu0 %v587
    %616 = vmatprep.subr.bf16.mxu0 %v590
    %617 = vmatpush1.bf16.msra.mxu0 %v589
    %618 = vmatprep.subr.bf16.mxu0 %v592
    %619 = vmatpush1.bf16.msra.mxu0 %v591
    %620 = vmatprep.subr.bf16.mxu0 %v612
    %621 = vmatpush1.bf16.msra.mxu0 %v609
    %622 = vmatprep.subr.bf16.mxu0 0
    %623 = vmatpush1.bf16.msra.mxu0 0
    %624 = vmatprep.subr.bf16.mxu0 0
    %625 = vmatpush1.bf16.msra.mxu0 0
    %626 = vmatprep.subr.bf16.mxu0 0
    %627 = vmatpush1.bf16.msra.mxu0 0
    %628 = vmatprep.subr.bf16.mxu0 0
    %629 = vmatpush1.bf16.msra.mxu0 0
    %630 = vmatprep.subr.bf16.mxu0 0
    %631 = vmatpush1.bf16.msra.mxu0 0
    %632 = vmatprep.subr.bf16.mxu0 0
    %633 = vmatpush1.bf16.msra.mxu0 0
    %634 = vmatprep.subr.bf16.mxu0 0
    %635 = vmatpush1.bf16.msra.mxu0 0
    %636 = vmatprep.subr.bf16.mxu0 0
    %637 = vmatpush1.bf16.msra.mxu0 0
    %638 = vmatprep.subr.bf16.mxu0 0
    %639 = vmatpush1.bf16.msra.mxu0 0
    %640 = vmatprep.subr.bf16.mxu0 0
    %641 = vmatpush1.bf16.msra.mxu0 0
    %642 = vmatprep.subr.bf16.mxu0 0
    %643 = vmatpush1.bf16.msra.mxu0 0
    %644 = vmatprep.subr.bf16.mxu0 0
    %645 = vmatpush1.bf16.msra.mxu0 0
    %646 = vmatprep.mubr.bf16.mxu0 0
    %647 = vmatmul.mubr.bf16.gmra.mrb[0].mxu0 %v606
    %v648 = vpop.f32.mrb[0].mxu0
    %v649 = vadd.f32 %v604, %v648
    %v650 = vpop.f32.mrb[0].mxu0
    %v651 = vadd.f32 %v604, %v650
    %v652 = vpop.f32.mrb[0].mxu0
    %v653 = vpop.f32.mrb[0].mxu0
    %654 = vdwg.mxu0
    %v655 = vxor.u32 %v649, 2147483648
    %v656 = vxor.u32 %v651, 2147483648
    %v657 = vmul.f32 %v655, 1.442695
    %v658 = vpow.pop %v657
    %v659 = vmul.f32 %v656, 1.442695
    %v660 = vpow.pop %v659
    %v661 = vadd.f32 %v658, 1.0
    %v662 = vadd.f32 %v660, 1.0
    %v663 = vrcp.pop %v661
    %v664 = vmul.f32 1.0, %v663
    %v665 = vrcp.pop %v662
    %v666 = vmul.f32 1.0, %v665
    %v669 = vcombine.low %v664, %v666
    %v671 = vunpack.c.l.s4 1966171168
    %v672 = vunpack.c.0.s8 %v671
    %v673 = vlaneseq
    %v674 = vshrl.u32 %v673, 7
    %v675 = vsub.s32 %v672, %v674
    %v676 = vrot.slane %v669, %v675
    %v678 = vunpack.c.l.s4 1966171168
    %v679 = vunpack.c.0.s8 %v678
    %v680 = vlaneseq
    %v681 = vshrl.u32 %v680, 7
    %v682 = vsub.s32 %v679, %v681
    %v683 = vrot.slane %v676, %v682
    %v685 = vlaneseq
    %vm686 = vcmp.ge.s32.totalorder %v685, 0
    %vm687 = vcmp.lt.s32.totalorder %v685, 256
    %vm688 = vmand %vm686, %vm687
    %689 = vst.msk [vmem:[#allocation3] sm:$0x3] %vm688, %v683
    // Predicated region
    $region30: #{tpu_custom_call.1} parent=1 // pred_check
      _
    $region31: #{tpu_custom_call.1} parent=1 // pred_check_branch
      %691 = sbr.rel (0) target = $region33
    $region32: #{tpu_custom_call.1} parent=1 // pred_region
      %s693 = ssub.s32 32, 32
      %694 = vsyncadd [#allocation4], %s693
      %s696 = sshll.u32 [#allocation3], 4
      %s697 = int_to_ptr.vmem [resolvable:$true] %s696
      %699 = dma.vmem_to_hbm [thread:$0]  %s697, 32, %s7, [#allocation4]
    $region33: #{tpu_custom_call.1} parent=1 // pred_fallthru
      _
    // Predicated region
    $region34: #{tpu_custom_call.1} parent=1 // pred_check
      _
    $region35: #{tpu_custom_call.1} parent=1 // pred_check_branch
      %701 = sbr.rel (0) target = $region37
    $region36: #{tpu_custom_call.1} parent=1 // pred_region
      %702 = dma.done [#allocation4], 32
    $region37: #{tpu_custom_call.1} parent=1 // pred_fallthru
      _
    %703 = vsyncpa [#allocation4], 1

</llo_original>
